<compile_context>
chip_gen: v5e
topology: v5e:2x2
jax: 0.10.0
libtpu: 0.0.40
codegen_flags: <defaults>
</compile_context>

<pallas_src>
import functools
import math

import numpy as np

import jax
import jax.numpy as jnp
from jax.experimental import pallas as pl
from jax.experimental.pallas import tpu as pltpu


# ----------------------------- hardware hints ------------------------------ #

def _device_kind() -> str:
    try:
        return jax.devices()[0].device_kind.lower()
    except Exception:
        return ""


def _vmem_capacity_bytes(kind: str) -> int:
    try:  # preferred: ask the runtime
        info = pltpu.get_tpu_info()
        for attr in ("vmem_capacity_bytes", "vmem_bytes", "vmem_size_bytes"):
            v = getattr(info, attr, None)
            if v:
                return int(v)
    except Exception:
        pass
    return (64 << 20) if "v7" in kind else (128 << 20)


def _lane_target(kind: str) -> int:
    # MXU contraction width: 256-wide on v6e/v7x, 128-wide on v5e and older.
    return 256 if ("v6" in kind or "v7" in kind) else 128


# ----------------------------- Pallas kernel ------------------------------- #

def _resize_norm_kernel(kind_ref, x_ref, rh_ref, rwt_ref, scale_ref, bias_ref,
                        o_ref, *, h_first):
    """One H_out tile of one block of bn lane-stacked planes:
       o = (Rh @ X @ blockdiag(Rw^T)) * scale_row + bias_row
    bf16 MXU operands, f32 accumulation, f32 per-lane affine."""
    del kind_ref                                   # consumed by index_maps only
    x = x_ref[0].astype(jnp.bfloat16)              # (H_in, bn*W_in)
    rh = rh_ref[0]                                 # (tile_h, H_in)      bf16
    rwt = rwt_ref[0]                               # (bn*W_in, bn*W_out) bf16
    if h_first:
        tmp = jnp.dot(rh, x, preferred_element_type=jnp.float32)
        out = jnp.dot(tmp.astype(jnp.bfloat16), rwt,
                      preferred_element_type=jnp.float32)
    else:
        tmp = jnp.dot(x, rwt, preferred_element_type=jnp.float32)
        out = jnp.dot(rh, tmp.astype(jnp.bfloat16),
                      preferred_element_type=jnp.float32)
    # fused per-lane affine (normalize for image planes, identity for mask)
    o_ref[0] = (out * scale_ref[0] + bias_ref[0]).astype(o_ref.dtype)


def pallas_resize_normalize(x_blocks, kind, rh_stack, rwt_stack,
                            scale_rows, bias_rows):
    """x_blocks: (G, H_in, bn*W_in) native dtype; kind: (G,) int32 selector;
    rh_stack: (2, H_out, H_in) bf16; rwt_stack: (2, bn*W_in, bn*W_out) bf16;
    scale_rows/bias_rows: (2, 1, bn*W_out) f32.  Returns (G, H_out, bn*W_out)."""
    g, h_in, lanes_in = x_blocks.shape
    h_out = rh_stack.shape[1]
    lanes_out = rwt_stack.shape[2]

    dkind = _device_kind()
    vmem_phys = _vmem_capacity_bytes(dkind)
    vmem_cap = (vmem_phys * 3) // 4                 # never ask for all of VMEM

    # ---- H_out tiling plan: bound per-step VMEM independent of resolution ----
    x_bytes = x_blocks.dtype.itemsize
    fixed = (2 * h_in * lanes_in * x_bytes          # x block, double-buffered
             + 2 * lanes_in * lanes_out * 2         # blockdiag(Rw^T), bf16, 2 bufs
             + 2 * 2 * lanes_out * 4                # scale + bias rows
             + h_in * lanes_in * 2                  # in-kernel bf16 copy of x
             + h_in * max(lanes_in, lanes_out) * 4)  # matmul temporary (w-first)
    per_row = (2 * h_in * 2                         # Rh tile, bf16, 2 bufs
               + 2 * lanes_out * 4                  # out tile, f32, 2 bufs
               + max(lanes_in, lanes_out) * 4)      # matmul temporary (h-first)
    budget = int(vmem_cap * 0.8)                    # headroom for Mosaic scratch
    tile_h = h_out
    if fixed + per_row * tile_h > budget:
        tile_h = max(8, ((budget - fixed) // per_row) // 8 * 8)
        tile_h = min(tile_h, h_out)
        # TODO(synk): if even 8 rows do not fit (gigantic lane counts), the lane
        # axis should be tiled as well.
    n_ht = pl.cdiv(h_out, tile_h)
    est_vmem = fixed + per_row * tile_h

    # compile-time matmul-order choice (total FLOPs across the H_out tiles)
    cost_h_first = h_out * h_in * lanes_in + h_out * lanes_in * lanes_out
    cost_w_first = n_ht * h_in * lanes_in * lanes_out + h_out * h_in * lanes_out
    h_first = cost_h_first <= cost_w_first

    flops = 2 * g * (cost_h_first if h_first else cost_w_first)
    bytes_accessed = (x_blocks.size * x_bytes + g * h_out * lanes_out * 4
                      + rh_stack.size * 2 + rwt_stack.size * 2
                      + (scale_rows.size + bias_rows.size) * 4)

    # generation-aware scoped-VMEM limit: >= every default, <= 3/4 of physical
    vmem_limit = int(min(vmem_cap, max(32 << 20, 2 * est_vmem)))

    # TODO(synk): single-buffer rh/rwt (pipeline_mode=pl.Buffered(1)) once that
    # BlockSpec arg is validated on the target jax build; their block index
    # changes at most once (kind) over the whole grid.
    return pl.pallas_call(
        functools.partial(_resize_norm_kernel, h_first=h_first),
        out_shape=jax.ShapeDtypeStruct((g, h_out, lanes_out), jnp.float32),
        grid_spec=pltpu.PrefetchScalarGridSpec(
            num_scalar_prefetch=1,
            grid=(g, n_ht),
            in_specs=[
                pl.BlockSpec((1, h_in, lanes_in),
                             lambda i, t, kind: (i, 0, 0)),
                pl.BlockSpec((1, tile_h, h_in),
                             lambda i, t, kind: (kind[i], t, 0)),
                pl.BlockSpec((1, lanes_in, lanes_out),
                             lambda i, t, kind: (kind[i], 0, 0)),
                pl.BlockSpec((1, 1, lanes_out),
                             lambda i, t, kind: (kind[i], 0, 0)),
                pl.BlockSpec((1, 1, lanes_out),
                             lambda i, t, kind: (kind[i], 0, 0)),
            ],
            out_specs=pl.BlockSpec((1, tile_h, lanes_out),
                                   lambda i, t, kind: (i, t, 0)),
        ),
        compiler_params=pltpu.CompilerParams(
            dimension_semantics=("parallel", "parallel"),
            vmem_limit_bytes=vmem_limit),
        cost_estimate=pl.CostEstimate(flops=int(flops), transcendentals=0,
                                      bytes_accessed=int(bytes_accessed)),
    )(kind, x_blocks, rh_stack, rwt_stack, scale_rows, bias_rows)


# --------------------- interpolation matrices (numpy) ---------------------- #

def _bilinear_matrix(out_size: int, in_size: int) -> np.ndarray:
    """(out, in) bilinear interpolation matrix, align_corners=True."""
    # TODO(synk): verify align_corners convention against the target kornia
    # version (Resize augmentation default assumed align_corners=True).
    if in_size == 1:
        return np.ones((out_size, 1), np.float32)
    if out_size == 1:
        src = np.zeros((1,), np.float64)
    else:
        src = np.arange(out_size, dtype=np.float64) * (
            (in_size - 1) / (out_size - 1))
    lo = np.clip(np.floor(src).astype(np.int64), 0, in_size - 2)
    frac = (src - lo).astype(np.float32)
    m = np.zeros((out_size, in_size), np.float32)
    rows = np.arange(out_size)
    m[rows, lo] += 1.0 - frac
    m[rows, lo + 1] += frac
    return m


def _nearest_matrix(out_size: int, in_size: int) -> np.ndarray:
    """(out, in) nearest-neighbor selection matrix."""
    src = np.floor(np.arange(out_size, dtype=np.float64) * (in_size / out_size))
    src = np.clip(src.astype(np.int64), 0, in_size - 1)
    m = np.zeros((out_size, in_size), np.float32)
    m[np.arange(out_size), src] = 1.0
    return m


# ------------------------- wrapper-side plumbing --------------------------- #

_NORM_MEAN = np.array([0.485, 0.456, 0.406], np.float32)
_NORM_STD = np.array([0.229, 0.224, 0.225], np.float32)


def _stack_planes(planes, bn):
    """(N, H, W) -> (ceil(N/bn), H, bn*W): bn planes side-by-side along lanes.
    A no-op when bn == 1 (the common large-frame case: no HBM relayout)."""
    n, h, w = planes.shape
    g = -(-n // bn)
    pad = g * bn - n
    if pad:
        planes = jnp.pad(planes, ((0, pad), (0, 0), (0, 0)))
    if bn == 1:
        return planes
    return planes.reshape(g, bn, h, w).transpose(0, 2, 1, 3).reshape(g, h, bn * w)


def _unstack_planes(blocks, bn, w):
    g, h, _ = blocks.shape
    if bn == 1:
        return blocks
    return blocks.reshape(g, h, bn, w).transpose(0, 2, 1, 3).reshape(g * bn, h, w)


def _choose_plane_batch(w_in, w_out, np_img, np_mask, lane_target):
    """bn planes per lane-stacked block.  bn % 3 == 0 so all image blocks share
    one normalize row; sized toward the MXU contraction width; bumped to a
    lane-dense (bn*W_out % 128 == 0) value when that costs <= 2x planes."""
    base = 3 if np_img else 1
    need = max(np_img, np_mask, 1)

    def rup(x, m):
        return -(-x // m) * m

    bn = rup(max(1, -(-lane_target // min(w_in, w_out))), base)
    bn = min(bn, rup(need, base))                    # don't pad far past real planes
    bn = max(bn, base)
    while bn > base and (bn * w_in) * (bn * w_out) * 2 > (4 << 20):
        bn -= base                                   # keep blockdiag(Rw^T) modest
    lane_mult = 128 // math.gcd(w_out, 128)
    l = base * lane_mult // math.gcd(base, lane_mult)   # lcm(base, lane_mult)
    bn_dense = rup(bn, l)
    if (bn_dense <= 2 * bn
            and (bn_dense * w_in) * (bn_dense * w_out) * 2 <= (4 << 20)):
        bn = bn_dense
    return bn


def valid_transform(img, mask, img_width: int, img_height: int):
    """img: (B, 3, H, W) NCHW; mask: (B, 1, H, W) NCHW.
    Returns (img_out, mask_out) with spatial size (img_width, img_height)."""
    b, c, h_in, w_in = img.shape
    bm, cm = mask.shape[0], mask.shape[1]
    assert c == 3, "Normalize constants assume 3 channels"
    h_out, w_out = img_width, img_height             # kornia size=(h, w)

    dkind = _device_kind()
    np_img, np_mask = b * c, bm * cm
    bn = _choose_plane_batch(w_in, w_out, np_img, np_mask, _lane_target(dkind))

    # lane-stacked plane blocks (native dtype; cast to bf16 inside the kernel)
    # TODO(synk): when bn > 1 this relayout is one extra HBM round trip; a
    # manual-DMA (memory_space=pl.ANY) gather of bn sub-planes per block would
    # remove it, but bn > 1 only occurs for tiny frames where it is cheap.
    x_img = _stack_planes(img.reshape(np_img, h_in, w_in), bn)
    x_msk = _stack_planes(mask.reshape(np_mask, h_in, w_in).astype(img.dtype), bn)
    gi, gm = x_img.shape[0], x_msk.shape[0]
    g = gi + gm
    x_blocks = jnp.concatenate([x_img, x_msk], axis=0)   # (G, H_in, bn*W_in)

    # trace-time constant interpolation matrices (numpy), shipped as bf16:
    # index 0 = image (bilinear), 1 = mask (nearest).
    eye = np.eye(bn, dtype=np.float32)
    rh_np = np.stack([_bilinear_matrix(h_out, h_in), _nearest_matrix(h_out, h_in)])
    rwt_np = np.stack([np.kron(eye, _bilinear_matrix(w_out, w_in).T),
                       np.kron(eye, _nearest_matrix(w_out, w_in).T)])
    rh_stack = jnp.asarray(rh_np, jnp.bfloat16)
    rwt_stack = jnp.asarray(rwt_np, jnp.bfloat16)

    # per-grid-step selector fed to BlockSpec index_maps via scalar prefetch
    kind = jnp.asarray([0] * gi + [1] * gm, jnp.int32)

    # per-lane affine rows indexed by kind (bn % 3 == 0 -> every image block
    # shares one row): (x - mean)/std == x*(1/std) + (-mean/std); identity for
    # mask planes.  Kept f32 so the normalize stays exact despite bf16 matmuls.
    ch = np.arange(bn) % c
    scale_np = np.stack([np.repeat((1.0 / _NORM_STD)[ch], w_out),
                         np.ones(bn * w_out, np.float32)])
    bias_np = np.stack([np.repeat((-_NORM_MEAN / _NORM_STD)[ch], w_out),
                        np.zeros(bn * w_out, np.float32)])
    scale_rows = jnp.asarray(scale_np[:, None, :], jnp.float32)
    bias_rows = jnp.asarray(bias_np[:, None, :], jnp.float32)

    out_blocks = pallas_resize_normalize(x_blocks, kind, rh_stack, rwt_stack,
                                         scale_rows, bias_rows)

    out_planes = _unstack_planes(out_blocks, bn, w_out)   # (G*bn, H_out, W_out)
    img_out = out_planes[:np_img].reshape(b, c, h_out, w_out)
    mask_out = out_planes[gi * bn: gi * bn + np_mask].reshape(bm, cm, h_out, w_out)
    return img_out, mask_out


# ------------------------------- reference --------------------------------- #

def _reference(img, mask, h_out, w_out):
    hp = jax.lax.Precision.HIGHEST
    f = img.astype(jnp.float32)
    rh_b = jnp.asarray(_bilinear_matrix(h_out, f.shape[2]))
    rw_b = jnp.asarray(_bilinear_matrix(w_out, f.shape[3]))
    img_r = jnp.einsum("oh,bchw->bcow", rh_b, f, precision=hp)
    img_r = jnp.einsum("bcow,vw->bcov", img_r, rw_b, precision=hp)
    mean = jnp.asarray(_NORM_MEAN)
    std = jnp.asarray(_NORM_STD)
    img_r = (img_r - mean[None, :, None, None]) / std[None, :, None, None]
    m = mask.astype(jnp.float32)
    rh_n = jnp.asarray(_nearest_matrix(h_out, m.shape[2]))
    rw_n = jnp.asarray(_nearest_matrix(w_out, m.shape[3]))
    msk_r = jnp.einsum("oh,bchw->bcow", rh_n, m, precision=hp)
    msk_r = jnp.einsum("bcow,vw->bcov", msk_r, rw_n, precision=hp)
    return img_r, msk_r


# ---------------------------------- main ----------------------------------- #

if __name__ == "__main__":
    key = jax.random.PRNGKey(0)
    k_img, k_mask = jax.random.split(key)

    B, C, H, W = 2, 3, 16, 16
    IMG_WIDTH, IMG_HEIGHT = 24, 20   # output spatial = (24, 20) as (H_out, W_out)

    img = jax.random.uniform(k_img, (B, C, H, W), dtype=jnp.float32)
    mask = (jax.random.uniform(k_mask, (B, 1, H, W)) > 0.5).astype(jnp.float32)

    fwd = jax.jit(functools.partial(valid_transform,
                                    img_width=IMG_WIDTH, img_height=IMG_HEIGHT))
    img_out, mask_out = fwd(img, mask)
    jax.block_until_ready((img_out, mask_out))

    assert img_out.shape == (B, C, IMG_WIDTH, IMG_HEIGHT)
    assert mask_out.shape == (B, 1, IMG_WIDTH, IMG_HEIGHT)

    img_ref, mask_ref = _reference(img, mask, IMG_WIDTH, IMG_HEIGHT)
    # bf16 MXU operands (f32 accumulation) -> slightly looser image tolerance;
    # nearest/mask path is exact in bf16.
    assert jnp.allclose(img_out, img_ref, atol=3e-2, rtol=2e-2)
    assert jnp.allclose(mask_out, mask_ref, atol=1e-5)
    print("KERNEL_OK")
</pallas_src>

<mosaic_0001>
module attributes {stable_mosaic.version = 11 : i64} {
  func.func @_resize_norm_kernel(%arg0: i32, %arg1: i32, %arg2: memref<2xi32, #tpu.memory_space<smem>>, %arg3: memref<1x16x96xf32, #tpu.memory_space<vmem>>, %arg4: memref<1x24x16xbf16, #tpu.memory_space<vmem>>, %arg5: memref<1x96x120xbf16, #tpu.memory_space<vmem>>, %arg6: memref<1x1x120xf32, #tpu.memory_space<vmem>>, %arg7: memref<1x1x120xf32, #tpu.memory_space<vmem>>, %arg8: memref<1x24x120xf32, #tpu.memory_space<vmem>>) attributes {dimension_semantics = [#tpu.dimension_semantics<parallel>, #tpu.dimension_semantics<parallel>], iteration_bounds = array<i64: 2, 1>, scalar_prefetch = 1 : i64, scratch_operands = 0 : i64, tpu.core_type = #tpu.core_type<tc>, window_params = [{transform_indices = @transform_0, window_bounds = array<i64: 1, 16, 96>}, {transform_indices = @transform_1, window_bounds = array<i64: 1, 24, 16>}, {transform_indices = @transform_2, window_bounds = array<i64: 1, 96, 120>}, {transform_indices = @transform_3, window_bounds = array<i64: 1, 1, 120>}, {transform_indices = @transform_4, window_bounds = array<i64: 1, 1, 120>}, {transform_indices = @transform_5, window_bounds = array<i64: 1, 24, 120>}]} {
    %c0 = arith.constant 0 : index
    %c0_0 = arith.constant 0 : index
    %c0_1 = arith.constant 0 : index
    %0 = vector.load %arg3[%c0, %c0_0, %c0_1] : memref<1x16x96xf32, #tpu.memory_space<vmem>>, vector<1x16x96xf32>
    %1 = vector.shape_cast %0 : vector<1x16x96xf32> to vector<16x96xf32>
    %2 = arith.truncf %1 : vector<16x96xf32> to vector<16x96xbf16>
    %c0_2 = arith.constant 0 : index
    %c0_3 = arith.constant 0 : index
    %c0_4 = arith.constant 0 : index
    %3 = vector.load %arg4[%c0_2, %c0_3, %c0_4] : memref<1x24x16xbf16, #tpu.memory_space<vmem>>, vector<1x24x16xbf16>
    %4 = vector.shape_cast %3 : vector<1x24x16xbf16> to vector<24x16xbf16>
    %c0_5 = arith.constant 0 : index
    %c0_6 = arith.constant 0 : index
    %c0_7 = arith.constant 0 : index
    %5 = vector.load %arg5[%c0_5, %c0_6, %c0_7] : memref<1x96x120xbf16, #tpu.memory_space<vmem>>, vector<1x96x120xbf16>
    %6 = vector.shape_cast %5 : vector<1x96x120xbf16> to vector<96x120xbf16>
    %cst = arith.constant dense<0.000000e+00> : vector<16x120xf32>
    %7 = tpu.matmul %2, %6, %cst {dimension_numbers = #tpu.dot_dimension_numbers<[1], [0], [0], [1], [0, 0, 1, 1], [], []>} : vector<16x96xbf16>, vector<96x120xbf16>, vector<16x120xf32> -> vector<16x120xf32>
    %8 = arith.truncf %7 : vector<16x120xf32> to vector<16x120xbf16>
    %cst_8 = arith.constant dense<0.000000e+00> : vector<24x120xf32>
    %9 = tpu.matmul %4, %8, %cst_8 {dimension_numbers = #tpu.dot_dimension_numbers<[1], [0], [0], [1], [0, 0, 1, 1], [], []>} : vector<24x16xbf16>, vector<16x120xbf16>, vector<24x120xf32> -> vector<24x120xf32>
    %c0_9 = arith.constant 0 : index
    %c0_10 = arith.constant 0 : index
    %c0_11 = arith.constant 0 : index
    %10 = vector.load %arg6[%c0_9, %c0_10, %c0_11] : memref<1x1x120xf32, #tpu.memory_space<vmem>>, vector<1x1x120xf32>
    %11 = vector.shape_cast %10 : vector<1x1x120xf32> to vector<1x120xf32>
    %12 = vector.broadcast %11 : vector<1x120xf32> to vector<24x120xf32>
    %13 = arith.mulf %9, %12 : vector<24x120xf32>
    %c0_12 = arith.constant 0 : index
    %c0_13 = arith.constant 0 : index
    %c0_14 = arith.constant 0 : index
    %14 = vector.load %arg7[%c0_12, %c0_13, %c0_14] : memref<1x1x120xf32, #tpu.memory_space<vmem>>, vector<1x1x120xf32>
    %15 = vector.shape_cast %14 : vector<1x1x120xf32> to vector<1x120xf32>
    %16 = vector.broadcast %15 : vector<1x120xf32> to vector<24x120xf32>
    %17 = arith.addf %13, %16 : vector<24x120xf32>
    %c0_15 = arith.constant 0 : index
    %c0_16 = arith.constant 0 : index
    %c0_17 = arith.constant 0 : index
    %18 = vector.load %arg8[%c0_15, %c0_16, %c0_17] : memref<1x24x120xf32, #tpu.memory_space<vmem>>, vector<1x24x120xf32>
    %19 = vector.shape_cast %18 : vector<1x24x120xf32> to vector<24x120xf32>
    %20 = vector.shape_cast %17 : vector<24x120xf32> to vector<1x24x120xf32>
    tpu.vector_store %arg8[%c0_15, %c0_16, %c0_17], %20 {strides = array<i32>} : memref<1x24x120xf32, #tpu.memory_space<vmem>>, vector<1x24x120xf32>,
    return
  }
  func.func @transform_0(%arg0: i32, %arg1: i32, %arg2: memref<2xi32, #tpu.memory_space<smem>>) -> (i32, i32, i32) {
    %c0_i32 = arith.constant 0 : i32
    %c0_i32_0 = arith.constant 0 : i32
    %c0_i32_1 = arith.constant 0 : i32
    return %arg0, %c0_i32, %c0_i32_0 : i32, i32, i32
  }
  func.func @transform_1(%arg0: i32, %arg1: i32, %arg2: memref<2xi32, #tpu.memory_space<smem>>) -> (i32, i32, i32) {
    %0 = arith.index_cast %arg0 : i32 to index
    %1 = memref.load %arg2[%0] : memref<2xi32, #tpu.memory_space<smem>>
    %c0_i32 = arith.constant 0 : i32
    %c0_i32_0 = arith.constant 0 : i32
    return %1, %arg1, %c0_i32 : i32, i32, i32
  }
  func.func @transform_2(%arg0: i32, %arg1: i32, %arg2: memref<2xi32, #tpu.memory_space<smem>>) -> (i32, i32, i32) {
    %0 = arith.index_cast %arg0 : i32 to index
    %1 = memref.load %arg2[%0] : memref<2xi32, #tpu.memory_space<smem>>
    %c0_i32 = arith.constant 0 : i32
    %c0_i32_0 = arith.constant 0 : i32
    %c0_i32_1 = arith.constant 0 : i32
    return %1, %c0_i32, %c0_i32_0 : i32, i32, i32
  }
  func.func @transform_3(%arg0: i32, %arg1: i32, %arg2: memref<2xi32, #tpu.memory_space<smem>>) -> (i32, i32, i32) {
    %0 = arith.index_cast %arg0 : i32 to index
    %1 = memref.load %arg2[%0] : memref<2xi32, #tpu.memory_space<smem>>
    %c0_i32 = arith.constant 0 : i32
    %c0_i32_0 = arith.constant 0 : i32
    %c0_i32_1 = arith.constant 0 : i32
    return %1, %c0_i32, %c0_i32_0 : i32, i32, i32
  }
  func.func @transform_4(%arg0: i32, %arg1: i32, %arg2: memref<2xi32, #tpu.memory_space<smem>>) -> (i32, i32, i32) {
    %0 = arith.index_cast %arg0 : i32 to index
    %1 = memref.load %arg2[%0] : memref<2xi32, #tpu.memory_space<smem>>
    %c0_i32 = arith.constant 0 : i32
    %c0_i32_0 = arith.constant 0 : i32
    %c0_i32_1 = arith.constant 0 : i32
    return %1, %c0_i32, %c0_i32_0 : i32, i32, i32
  }
  func.func @transform_5(%arg0: i32, %arg1: i32, %arg2: memref<2xi32, #tpu.memory_space<smem>>) -> (i32, i32, i32) {
    %c0_i32 = arith.constant 0 : i32
    %c0_i32_0 = arith.constant 0 : i32
    return %arg0, %arg1, %c0_i32 : i32, i32, i32
  }
}

</mosaic_0001>

<llo_original>
// kernel: valid_transform.1
$region0: #{valid_transform.1}
  #allocation0 [shape = 'u32[]', space=smem, size = 0x4, offset = 0x4, fixed_abs, tag = 'smem constant byte address 0x4 - core index']
  #allocation1 [shape = 'u32[72,128]{1,0:T(1,128)}', space=vmem, size = 0x9000, scoped, tag = 'internal scratch']
  #allocation2 [shape = 's32[1]{0}', space=sflag, size = 0x4, scoped, tag = 'scoped memory for valid_transform.1']
  #allocation3 [shape = 'u8[512]{0}', space=smem, size = 0x200, scoped, tag = 'prefetched SMEM operand 0']
  %s0 = inlined_call_operand.vmem [shape: s32[2], index: 0, kind: input, shape index: {}]
  %s1 = inlined_call_operand.vmem [shape: f32[2,16,96], index: 1, kind: input, shape index: {}]
  %s2 = inlined_call_operand.vmem [shape: bf16[2,24,16], index: 2, kind: input, shape index: {}]
  %s3 = inlined_call_operand.vmem [shape: bf16[2,96,120], index: 3, kind: input, shape index: {}]
  %s4 = inlined_call_operand.vmem [shape: f32[2,1,120], index: 4, kind: input, shape index: {}]
  %s5 = inlined_call_operand.vmem [shape: f32[2,1,120], index: 5, kind: input, shape index: {}]
  %s6 = inlined_call_operand.vmem [shape: f32[2,24,120], index: 6, kind: output, shape index: {}]
  %s7 = sld [smem:[#allocation0]]
  $region53: #{valid_transform.1} parent=0
    _
  %s9 = ssub.s32 1, %s7
  %s10 = scalar_select 0, %s9, %s7
  %s12 = sshll.u32 %s0, 4
  %s13 = int_to_ptr.vmem [resolvable:$true] %s12
  %15 = dma.vmem_to_smem %s13, 16, [#allocation3], [#allocation2]
  %17 = dma.done [#allocation2], 16
  %18 = sfence
  loop: start=0, step=1, limit=4
  $region2: #{valid_transform.1} parent=0 // loop_pre_header
    _
  $region3: #{valid_transform.1} parent=0 // loop_header
    %s20 = sphi 0, %s24
    %p21 = scmp.ge.s32.totalorder %s20, 4
    %s27 = sphi 0, %s39
    %s28 = sphi 0, %s35
    %s29 = sphi 0, %s27
    %s30 = sphi 0, %s28
    %s31 = sphi 0, %s29
    %s32 = sphi 0, %s30
    %s42 = sphi 0, %s44
    %s45 = sphi 0, %s42
    %s46 = sphi 0, %s45
    %s62 = sphi 0, %s46
    %s72 = sphi 0, %s74
    %s75 = sphi 0, %s72
    %s76 = sphi 0, %s75
    %s92 = sphi 0, %s76
    %s100 = sphi 0, %s102
    %s103 = sphi 0, %s100
    %s104 = sphi 0, %s103
    %s120 = sphi 0, %s104
    %s128 = sphi 0, %s130
    %s131 = sphi 0, %s128
    %s132 = sphi 0, %s131
    %s148 = sphi 0, %s132
    %s156 = sphi 0, %s158
    %s159 = sphi 0, %s156
    %s160 = sphi 0, %s159
    %s176 = sphi 0, %s160
    %s184 = sphi 0, %s186
    %s187 = sphi 0, %s184
    %s188 = sphi 0, %s187
    %s204 = sphi 0, %s188
  $region4: #{valid_transform.1} parent=0 // loop_header_branch
    %23 = sbr.rel (%p21) target = $region8
  $region5: #{valid_transform.1} parent=0 // loop_body
    %s25 = ssub.s32 %s20, 1
    %s26 = ssub.s32 %s20, 2
    %s33 = sadd.s32 1, %s28
    %p34 = scmp.ge.s32.totalorder %s33, 1
    %s35 = scalar_select %p34, 0, %s33
    %s36 = sadd.s32 1, %s27
    %s37 = scalar_select %p34, %s36, %s27
    %p38 = scmp.ge.s32.totalorder %s37, 2
    %s39 = scalar_select %p38, 0, %s37
    %s40 = ssub.s32 %s27, %s39
    %p41 = scmp.eq.s32.totalorder %s40, 0
    %s43 = sadd.s32 %s42, 1
    %s44 = scalar_select %p41, %s42, %s43
    %p47 = pneg %p41
    %p48 = scmp.eq.s32.totalorder %s20, 1
    %p49 = por %p47, %p48
    %p50 = scmp.ne.s32.totalorder %s42, %s45
    %p51 = scmp.eq.s32.totalorder %s20, 0
    %p52 = por %p50, %p51
    %p53 = scmp.ne.s32.totalorder %s42, %s45
    %p54 = scmp.eq.s32.totalorder %s25, 1
    %p55 = por %p53, %p54
    %p56 = scmp.ne.s32.totalorder %s45, %s46
    %p57 = scmp.eq.s32.totalorder %s25, 0
    %p58 = por %p56, %p57
    %p59 = scmp.ne.s32.totalorder %s45, %s46
    %p60 = scmp.eq.s32.totalorder %s26, 1
    %p61 = por %p59, %p60
    %p63 = scmp.ne.s32.totalorder %s46, %s62
    %p64 = scmp.eq.s32.totalorder %s26, 0
    %p65 = por %p63, %p64
    %s66 = sld [smem:[#allocation3 + %s27]]
    %s67 = sld [smem:[#allocation3 + %s39]]
    %s68 = ssub.s32 %s66, %s67
    %s69 = ssub.s32 %s28, %s35
    %s70 = sor.u32 %s68, %s69
    %p71 = scmp.eq.s32.totalorder %s70, 0
    %s73 = sadd.s32 %s72, 1
    %s74 = scalar_select %p71, %s72, %s73
    %p77 = pneg %p71
    %p78 = scmp.eq.s32.totalorder %s20, 1
    %p79 = por %p77, %p78
    %p80 = scmp.ne.s32.totalorder %s72, %s75
    %p81 = scmp.eq.s32.totalorder %s20, 0
    %p82 = por %p80, %p81
    %p83 = scmp.ne.s32.totalorder %s72, %s75
    %p84 = scmp.eq.s32.totalorder %s25, 1
    %p85 = por %p83, %p84
    %p86 = scmp.ne.s32.totalorder %s75, %s76
    %p87 = scmp.eq.s32.totalorder %s25, 0
    %p88 = por %p86, %p87
    %p89 = scmp.ne.s32.totalorder %s75, %s76
    %p90 = scmp.eq.s32.totalorder %s26, 1
    %p91 = por %p89, %p90
    %p93 = scmp.ne.s32.totalorder %s76, %s92
    %p94 = scmp.eq.s32.totalorder %s26, 0
    %p95 = por %p93, %p94
    %s96 = sld [smem:[#allocation3 + %s27]]
    %s97 = sld [smem:[#allocation3 + %s39]]
    %s98 = ssub.s32 %s96, %s97
    %p99 = scmp.eq.s32.totalorder %s98, 0
    %s101 = sadd.s32 %s100, 1
    %s102 = scalar_select %p99, %s100, %s101
    %p105 = pneg %p99
    %p106 = scmp.eq.s32.totalorder %s20, 1
    %p107 = por %p105, %p106
    %p108 = scmp.ne.s32.totalorder %s100, %s103
    %p109 = scmp.eq.s32.totalorder %s20, 0
    %p110 = por %p108, %p109
    %p111 = scmp.ne.s32.totalorder %s100, %s103
    %p112 = scmp.eq.s32.totalorder %s25, 1
    %p113 = por %p111, %p112
    %p114 = scmp.ne.s32.totalorder %s103, %s104
    %p115 = scmp.eq.s32.totalorder %s25, 0
    %p116 = por %p114, %p115
    %p117 = scmp.ne.s32.totalorder %s103, %s104
    %p118 = scmp.eq.s32.totalorder %s26, 1
    %p119 = por %p117, %p118
    %p121 = scmp.ne.s32.totalorder %s104, %s120
    %p122 = scmp.eq.s32.totalorder %s26, 0
    %p123 = por %p121, %p122
    %s124 = sld [smem:[#allocation3 + %s27]]
    %s125 = sld [smem:[#allocation3 + %s39]]
    %s126 = ssub.s32 %s124, %s125
    %p127 = scmp.eq.s32.totalorder %s126, 0
    %s129 = sadd.s32 %s128, 1
    %s130 = scalar_select %p127, %s128, %s129
    %p133 = pneg %p127
    %p134 = scmp.eq.s32.totalorder %s20, 1
    %p135 = por %p133, %p134
    %p136 = scmp.ne.s32.totalorder %s128, %s131
    %p137 = scmp.eq.s32.totalorder %s20, 0
    %p138 = por %p136, %p137
    %p139 = scmp.ne.s32.totalorder %s128, %s131
    %p140 = scmp.eq.s32.totalorder %s25, 1
    %p141 = por %p139, %p140
    %p142 = scmp.ne.s32.totalorder %s131, %s132
    %p143 = scmp.eq.s32.totalorder %s25, 0
    %p144 = por %p142, %p143
    %p145 = scmp.ne.s32.totalorder %s131, %s132
    %p146 = scmp.eq.s32.totalorder %s26, 1
    %p147 = por %p145, %p146
    %p149 = scmp.ne.s32.totalorder %s132, %s148
    %p150 = scmp.eq.s32.totalorder %s26, 0
    %p151 = por %p149, %p150
    %s152 = sld [smem:[#allocation3 + %s27]]
    %s153 = sld [smem:[#allocation3 + %s39]]
    %s154 = ssub.s32 %s152, %s153
    %p155 = scmp.eq.s32.totalorder %s154, 0
    %s157 = sadd.s32 %s156, 1
    %s158 = scalar_select %p155, %s156, %s157
    %p161 = pneg %p155
    %p162 = scmp.eq.s32.totalorder %s20, 1
    %p163 = por %p161, %p162
    %p164 = scmp.ne.s32.totalorder %s156, %s159
    %p165 = scmp.eq.s32.totalorder %s20, 0
    %p166 = por %p164, %p165
    %p167 = scmp.ne.s32.totalorder %s156, %s159
    %p168 = scmp.eq.s32.totalorder %s25, 1
    %p169 = por %p167, %p168
    %p170 = scmp.ne.s32.totalorder %s159, %s160
    %p171 = scmp.eq.s32.totalorder %s25, 0
    %p172 = por %p170, %p171
    %p173 = scmp.ne.s32.totalorder %s159, %s160
    %p174 = scmp.eq.s32.totalorder %s26, 1
    %p175 = por %p173, %p174
    %p177 = scmp.ne.s32.totalorder %s160, %s176
    %p178 = scmp.eq.s32.totalorder %s26, 0
    %p179 = por %p177, %p178
    %s180 = ssub.s32 %s27, %s39
    %s181 = ssub.s32 %s28, %s35
    %s182 = sor.u32 %s180, %s181
    %p183 = scmp.eq.s32.totalorder %s182, 0
    %s185 = sadd.s32 %s184, 1
    %s186 = scalar_select %p183, %s184, %s185
    %p189 = pneg %p183
    %p190 = scmp.eq.s32.totalorder %s20, 1
    %p191 = por %p189, %p190
    %p192 = scmp.ne.s32.totalorder %s184, %s187
    %p193 = scmp.eq.s32.totalorder %s20, 0
    %p194 = por %p192, %p193
    %p195 = scmp.ne.s32.totalorder %s184, %s187
    %p196 = scmp.eq.s32.totalorder %s25, 1
    %p197 = por %p195, %p196
    %p198 = scmp.ne.s32.totalorder %s187, %s188
    %p199 = scmp.eq.s32.totalorder %s25, 0
    %p200 = por %p198, %p199
    %p201 = scmp.ne.s32.totalorder %s187, %s188
    %p202 = scmp.eq.s32.totalorder %s26, 1
    %p203 = por %p201, %p202
    %p205 = scmp.ne.s32.totalorder %s188, %s204
    %p206 = scmp.eq.s32.totalorder %s26, 0
    %p207 = por %p205, %p206
    %p208 = scmp.le.s32.totalorder 1, %s20
    %p209 = scmp.lt.s32.totalorder %s20, 3
    %p210 = pnand %p208, %p209
    %p211 = pneg %p210
    // Predicated region
    $region9: #{valid_transform.1} parent=5 // pred_check
      _
    $region10: #{valid_transform.1} parent=5 // pred_check_branch
      %213 = sbr.rel (%p210) target = $region12
    $region11: #{valid_transform.1} parent=5 // pred_region
      %s214 = ssub.s32 %s20, 1
    $region12: #{valid_transform.1} parent=5 // pred_fallthru
      _
    %p215 = scmp.lt.s32.totalorder %s20, 2
    // Predicated region
    $region13: #{valid_transform.1} parent=5 // pred_check
      %p216 = pneg %p215
    $region14: #{valid_transform.1} parent=5 // pred_check_branch
      %218 = sbr.rel (%p216) target = $region16
    $region15: #{valid_transform.1} parent=5 // pred_region
      // Predicated region
      $region17: #{valid_transform.1} parent=15 // pred_check
        %p219 = pneg %p52
      $region18: #{valid_transform.1} parent=15 // pred_check_branch
        %221 = sbr.rel (%p219) target = $region20
      $region19: #{valid_transform.1} parent=15 // pred_region
        %p222 = scmp.lt.s32.totalorder %s27, 1
        %s223 = scalar_select %p222, %s27, 1
        %s224 = smul.addr %s223, 2
        %s225 = smul.addr %s224, 8
        %s226 = scalar_lea.vmem %s1, %s225
      $region20: #{valid_transform.1} parent=15 // pred_fallthru
        _
      // Predicated region
      $region21: #{valid_transform.1} parent=15 // pred_check
        %p227 = pneg %p82
      $region22: #{valid_transform.1} parent=15 // pred_check_branch
        %229 = sbr.rel (%p227) target = $region24
      $region23: #{valid_transform.1} parent=15 // pred_region
        %s230 = sld [smem:[#allocation3 + %s27]]
        %s231 = smul.u32 3, %s28
        %p232 = scmp.lt.s32.totalorder %s230, 1
        %s233 = scalar_select %p232, %s230, 1
        %p234 = scmp.lt.s32.totalorder %s231, 2
        %s235 = scalar_select %p234, %s231, 2
        %s236 = smul.addr %s233, 3
        %s237 = sadd.s32 %s235, %s236
        %s238 = smul.addr %s237, 4
        %s239 = scalar_lea.vmem %s2, %s238
        %s240 = sld [smem:[#allocation3 + %s27]]
        %s241 = smul.u32 3, %s28
      $region24: #{valid_transform.1} parent=15 // pred_fallthru
        _
      // Predicated region
      $region25: #{valid_transform.1} parent=15 // pred_check
        %p242 = pneg %p110
      $region26: #{valid_transform.1} parent=15 // pred_check_branch
        %244 = sbr.rel (%p242) target = $region28
      $region27: #{valid_transform.1} parent=15 // pred_region
        %s245 = sld [smem:[#allocation3 + %s27]]
        %p246 = scmp.lt.s32.totalorder %s245, 1
        %s247 = scalar_select %p246, %s245, 1
        %s248 = smul.addr %s247, 12
        %s249 = smul.addr %s248, 4
        %s250 = scalar_lea.vmem %s3, %s249
        %s251 = sld [smem:[#allocation3 + %s27]]
      $region28: #{valid_transform.1} parent=15 // pred_fallthru
        _
      // Predicated region
      $region29: #{valid_transform.1} parent=15 // pred_check
        %p252 = pneg %p138
      $region30: #{valid_transform.1} parent=15 // pred_check_branch
        %254 = sbr.rel (%p252) target = $region32
      $region31: #{valid_transform.1} parent=15 // pred_region
        %s255 = sld [smem:[#allocation3 + %s27]]
        %p256 = scmp.lt.s32.totalorder %s255, 1
        %s257 = scalar_select %p256, %s255, 1
        %s258 = scalar_lea.vmem %s4, %s257
        %s259 = sld [smem:[#allocation3 + %s27]]
      $region32: #{valid_transform.1} parent=15 // pred_fallthru
        _
      // Predicated region
      $region33: #{valid_transform.1} parent=15 // pred_check
        %p260 = pneg %p166
      $region34: #{valid_transform.1} parent=15 // pred_check_branch
        %262 = sbr.rel (%p260) target = $region36
      $region35: #{valid_transform.1} parent=15 // pred_region
        %s263 = sld [smem:[#allocation3 + %s27]]
        %p264 = scmp.lt.s32.totalorder %s263, 1
        %s265 = scalar_select %p264, %s263, 1
        %s266 = scalar_lea.vmem %s5, %s265
        %s267 = sld [smem:[#allocation3 + %s27]]
      $region36: #{valid_transform.1} parent=15 // pred_fallthru
        _
    $region16: #{valid_transform.1} parent=5 // pred_fallthru
      _
    %p268 = scmp.le.s32.totalorder 1, %s20
    %p269 = scmp.lt.s32.totalorder %s20, 3
    %p270 = pnand %p268, %p269
    %p271 = pneg %p270
    // Predicated region
    $region37: #{valid_transform.1} parent=5 // pred_check
      _
    $region38: #{valid_transform.1} parent=5 // pred_check_branch
      %273 = sbr.rel (%p270) target = $region40
    $region39: #{valid_transform.1} parent=5 // pred_region
      %s274 = ssub.s32 %s20, 1
      %p275 = scmp.lt.s32.totalorder %s29, 1
      %s276 = scalar_select %p275, %s29, 1
      %s277 = smul.addr %s276, 2
      %s278 = smul.addr %s277, 8
      %s279 = scalar_lea.vmem %s1, %s278
      %p280 = pneg %p58
      %p281 = pneg %p55
      %s282 = sld [smem:[#allocation3 + %s29]]
      %s283 = smul.u32 3, %s30
      %p284 = scmp.lt.s32.totalorder %s282, 1
      %s285 = scalar_select %p284, %s282, 1
      %p286 = scmp.lt.s32.totalorder %s283, 2
      %s287 = scalar_select %p286, %s283, 2
      %s288 = smul.addr %s285, 3
      %s289 = sadd.s32 %s287, %s288
      %s290 = smul.addr %s289, 4
      %s291 = scalar_lea.vmem %s2, %s290
      %p292 = pneg %p88
      %p293 = pneg %p85
      %s294 = sld [smem:[#allocation3 + %s29]]
      %p295 = scmp.lt.s32.totalorder %s294, 1
      %s296 = scalar_select %p295, %s294, 1
      %s297 = smul.addr %s296, 12
      %s298 = smul.addr %s297, 4
      %s299 = scalar_lea.vmem %s3, %s298
      %p300 = pneg %p116
      %p301 = pneg %p113
      %s302 = sld [smem:[#allocation3 + %s29]]
      %p303 = scmp.lt.s32.totalorder %s302, 1
      %s304 = scalar_select %p303, %s302, 1
      %s305 = scalar_lea.vmem %s4, %s304
      %p306 = pneg %p144
      %p307 = pneg %p141
      %s308 = sld [smem:[#allocation3 + %s29]]
      %p309 = scmp.lt.s32.totalorder %s308, 1
      %s310 = scalar_select %p309, %s308, 1
      %s311 = scalar_lea.vmem %s5, %s310
      %p312 = pneg %p172
      %p313 = pneg %p169
      %p314 = pneg %p200
      %p315 = pneg %p197
      %s316 = smul.u32 3, %s30
      %p317 = scmp.lt.s32.totalorder %s29, 1
      %s318 = scalar_select %p317, %s29, 1
      %p319 = scmp.lt.s32.totalorder %s316, 2
      %s320 = scalar_select %p319, %s316, 2
      %s321 = smul.addr %s318, 3
      %s322 = sadd.s32 %s320, %s321
      %s323 = smul.addr %s322, 8
      %s324 = scalar_lea.vmem %s6, %s323
      %p325 = scmp.lt.s32.totalorder %s29, 1
      %s326 = scalar_select %p325, %s29, 1
      %s327 = smul.addr %s326, 2
      %s328 = smul.addr %s327, 8
      %s329 = scalar_lea.vmem %s1, %s328
      %s330 = sld [smem:[#allocation3 + %s29]]
      %s331 = smul.u32 3, %s30
      %p332 = scmp.lt.s32.totalorder %s330, 1
      %s333 = scalar_select %p332, %s330, 1
      %p334 = scmp.lt.s32.totalorder %s331, 2
      %s335 = scalar_select %p334, %s331, 2
      %s336 = smul.addr %s333, 3
      %s337 = sadd.s32 %s335, %s336
      %s338 = smul.addr %s337, 4
      %s339 = scalar_lea.vmem %s2, %s338
      %s340 = sld [smem:[#allocation3 + %s29]]
      %s341 = smul.u32 3, %s30
      %s342 = sld [smem:[#allocation3 + %s29]]
      %p343 = scmp.lt.s32.totalorder %s342, 1
      %s344 = scalar_select %p343, %s342, 1
      %s345 = smul.addr %s344, 12
      %s346 = smul.addr %s345, 4
      %s347 = scalar_lea.vmem %s3, %s346
      %s348 = sld [smem:[#allocation3 + %s29]]
      %s349 = sld [smem:[#allocation3 + %s29]]
      %p350 = scmp.lt.s32.totalorder %s349, 1
      %s351 = scalar_select %p350, %s349, 1
      %s352 = scalar_lea.vmem %s4, %s351
      %s353 = sld [smem:[#allocation3 + %s29]]
      %s354 = sld [smem:[#allocation3 + %s29]]
      %p355 = scmp.lt.s32.totalorder %s354, 1
      %s356 = scalar_select %p355, %s354, 1
      %s357 = scalar_lea.vmem %s5, %s356
      %s358 = sld [smem:[#allocation3 + %s29]]
      %s359 = smul.u32 3, %s30
      %p360 = scmp.lt.s32.totalorder %s29, 1
      %s361 = scalar_select %p360, %s29, 1
      %p362 = scmp.lt.s32.totalorder %s359, 2
      %s363 = scalar_select %p362, %s359, 2
      %s364 = smul.addr %s361, 3
      %s365 = sadd.s32 %s363, %s364
      %s366 = smul.addr %s365, 8
      %s367 = scalar_lea.vmem %s6, %s366
      %s368 = smul.u32 3, %s30
      %v370 = vld [vmem:[%s329] sm:$0xff]
      %v371 = vld [vmem:[%s329 + $0x8] sm:$0xff]
      %v372 = vpack.c.bf16 %v371, %v370
      %v373 = vld [vmem:[%s339] sm:$0xf]
      %v374 = vld [vmem:[%s339 + $0x4] sm:$0xf]
      %v375 = vld [vmem:[%s339 + $0x8] sm:$0xf]
      %v376 = vld [vmem:[%s347] sm:$0xf]
      %v377 = vld [vmem:[%s347 + $0x4] sm:$0xf]
      %v378 = vld [vmem:[%s347 + $0x8] sm:$0xf]
      %v379 = vld [vmem:[%s347 + $0xc] sm:$0xf]
      %v380 = vld [vmem:[%s347 + $0x10] sm:$0xf]
      %v381 = vld [vmem:[%s347 + $0x14] sm:$0xf]
      %v382 = vld [vmem:[%s347 + $0x18] sm:$0xf]
      %v383 = vld [vmem:[%s347 + $0x1c] sm:$0xf]
      %v384 = vld [vmem:[%s347 + $0x20] sm:$0xf]
      %v385 = vld [vmem:[%s347 + $0x24] sm:$0xf]
      %v386 = vld [vmem:[%s347 + $0x28] sm:$0xf]
      %v387 = vld [vmem:[%s347 + $0x2c] sm:$0xf]
      %v400 = vunpack.c.l.b16 %v376
      %v401 = vunpack.c.l.b16 %v377
      %v402 = vunpack.c.l.b16 %v378
      %v403 = vunpack.c.l.b16 %v379
      %v404 = vunpack.c.l.b16 %v380
      %v405 = vunpack.c.l.b16 %v381
      %v406 = vunpack.c.l.b16 %v382
      %v407 = vunpack.c.l.b16 %v383
      %v408 = vunpack.c.l.b16 %v384
      %v409 = vunpack.c.l.b16 %v385
      %v410 = vunpack.c.l.b16 %v386
      %v411 = vunpack.c.l.b16 %v387
      %v412 = vpack.c.b16 %v401, %v400
      %v413 = vpack.c.b16 %v403, %v402
      %v414 = vpack.c.b16 %v405, %v404
      %v415 = vpack.c.b16 %v407, %v406
      %v416 = vpack.c.b16 %v409, %v408
      %v417 = vpack.c.b16 %v411, %v410
      %vm424 = vcmask 785408
      %v426 = vsel %vm424, %v372, 0
      %428 = vmatpush.bf16.msra.mxu0 0
      %429 = vmatpush.bf16.msra.mxu0 0
      %430 = vmatpush.bf16.msra.mxu0 %v417
      %431 = vmatpush.bf16.msra.mxu0 %v416
      %432 = vmatpush.bf16.msra.mxu0 %v415
      %433 = vmatpush.bf16.msra.mxu0 %v414
      %434 = vmatpush.bf16.msra.mxu0 %v413
      %435 = vmatpush.bf16.msra.mxu0 %v412
      %436 = vmatmul.bf16.gmra.mxu0 %v426
      %v437 = vpop.f32.mrf.mxu0
      %v438 = vadd.f32 0.0, %v437
      %v439 = vpop.f32.mrf.mxu0
      %v440 = vadd.f32 0.0, %v439
      %441 = vdwg.mxu0
      %v442 = vpack.c.bf16 %v440, %v438
      %v446 = vunpack.c.l.b16 %v373
      %v447 = vunpack.c.l.b16 %v374
      %v448 = vunpack.c.l.b16 %v375
      %v449 = vpack.c.b16 %v447, %v446
      %v450 = vpack.c.b16 %v448, %v448
      %vm451 = vcmask 130048
      %v453 = vsel %vm451, %v449, 0
      %v456 = vsel %vm451, %v450, 0
      %458 = vmatpush.bf16.msra.mxu0 0
      %459 = vmatpush.bf16.msra.mxu0 0
      %460 = vmatpush.bf16.msra.mxu0 0
      %461 = vmatpush.bf16.msra.mxu0 0
      %462 = vmatpush.bf16.msra.mxu0 0
      %463 = vmatpush.bf16.msra.mxu0 0
      %464 = vmatpush.bf16.msra.mxu0 0
      %465 = vmatpush.bf16.msra.mxu0 %v442
      %466 = vmatmul.bf16.gmra.mxu0 %v453
      %v467 = vpop.f32.mrf.mxu0
      %v468 = vadd.f32 0.0, %v467
      %v469 = vpop.f32.mrf.mxu0
      %v470 = vadd.f32 0.0, %v469
      %471 = vmatmul.bf16.gmra.mxu0 %v456
      %v472 = vpop.f32.mrf.mxu0
      %v473 = vadd.f32 0.0, %v472
      %v474 = vpop.f32.mrf.mxu0
      %475 = vdwg.mxu0
      %v476 = vld [vmem:[%s352] sm:$0x1]
      %v478 = vperm.slane %v476, 0
      %v480 = vmul.f32 %v468, %v478
      %v481 = vmul.f32 %v470, %v478
      %v482 = vmul.f32 %v473, %v478
      %v483 = vld [vmem:[%s357] sm:$0x1]
      %v485 = vperm.slane %v483, 0
      %v487 = vadd.f32 %v480, %v485
      %v488 = vadd.f32 %v481, %v485
      %v489 = vadd.f32 %v482, %v485
      %vm490 = vcmask 982016
      %491 = vst.msk [vmem:[%s367] sm:$0xff] %vm490, %v487
      %492 = vst.msk [vmem:[%s367 + $0x8] sm:$0xff] %vm490, %v488
      %493 = vst.msk [vmem:[%s367 + $0x10] sm:$0xff] %vm490, %v489
      %s494 = smul.u32 3, %s30
      %p495 = scmp.lt.s32.totalorder %s29, 1
      %s496 = scalar_select %p495, %s29, 1
      %p497 = scmp.lt.s32.totalorder %s494, 2
      %s498 = scalar_select %p497, %s494, 2
      %s499 = smul.addr %s496, 3
      %s500 = sadd.s32 %s498, %s499
      %s501 = smul.addr %s500, 8
      %s502 = scalar_lea.vmem %s6, %s501
      // Predicated region
      $region41: #{valid_transform.1} parent=39 // pred_check
        %p503 = pneg %p197
      $region42: #{valid_transform.1} parent=39 // pred_check_branch
        %505 = sbr.rel (%p503) target = $region44
      $region43: #{valid_transform.1} parent=39 // pred_region
        %s506 = smul.u32 3, %s30
      $region44: #{valid_transform.1} parent=39 // pred_fallthru
        _
    $region40: #{valid_transform.1} parent=5 // pred_fallthru
      _
    %p507 = scmp.le.s32.totalorder 2, %s20
    // Predicated region
    $region45: #{valid_transform.1} parent=5 // pred_check
      %p508 = pneg %p507
    $region46: #{valid_transform.1} parent=5 // pred_check_branch
      %510 = sbr.rel (%p508) target = $region48
    $region47: #{valid_transform.1} parent=5 // pred_region
      %s511 = ssub.s32 %s20, 2
      // Predicated region
      $region49: #{valid_transform.1} parent=47 // pred_check
        %p512 = pneg %p203
      $region50: #{valid_transform.1} parent=47 // pred_check_branch
        %514 = sbr.rel (%p512) target = $region52
      $region51: #{valid_transform.1} parent=47 // pred_region
        %s515 = smul.u32 3, %s32
        %p516 = scmp.lt.s32.totalorder %s31, 1
        %s517 = scalar_select %p516, %s31, 1
        %p518 = scmp.lt.s32.totalorder %s515, 2
        %s519 = scalar_select %p518, %s515, 2
        %s520 = smul.addr %s517, 3
        %s521 = sadd.s32 %s519, %s520
        %s522 = smul.addr %s521, 8
        %s523 = scalar_lea.vmem %s6, %s522
      $region52: #{valid_transform.1} parent=47 // pred_fallthru
        _
    $region48: #{valid_transform.1} parent=5 // pred_fallthru
      _
  $region6: #{valid_transform.1} parent=0 // loop_footer
    %s24 = sadd.s32 1, %s20
  $region7: #{valid_transform.1} parent=0 // loop_footer_branch
    %19 = sbr.rel target = $region3
  $region8: #{valid_transform.1} parent=0 // loop_exit
    _

</llo_original>
